<compile_context>
chip_gen: v5e
topology: v5e:2x2
jax: 0.10.0
libtpu: 0.0.40
codegen_flags: <defaults>
</compile_context>

<pallas_src>
import jax
import jax.numpy as jnp
from jax.experimental import pallas as pl
from jax.experimental.pallas import tpu as pltpu

# ---- configuration (matches revLB(in_size=48, out_size=16)) ----
IN_SIZE = 48
OUT_SIZE = 16                  # cat_in channels == Conv3d in/out channels
CX = IN_SIZE - OUT_SIZE        # 32: channels of `x` so that concat gives in_size
C12 = IN_SIZE // 12            # 4
C6 = IN_SIZE // 6              # 8
C8 = IN_SIZE // 8              # 6
C4 = IN_SIZE // 4              # 12
KD = 5                         # Conv3d depth kernel; cat_in depth must be 5
BN_EPS = 0.01

N, H, W = 2, 16, 16
HW = H * W                     # 256 (lane dim)

CSQ = OUT_SIZE * KD            # 80: flattened (ci, kd) channels of cat_in
CIN_K = CX + CSQ               # 112: packed weight-matrix width
NHEAD = 3 * C12                # 12: fused 1x1-head output channels [h2|h3|b1]
CJ = 2 * C12                   # 8:  joint [h2|h3] channels
KJ = 9 * CJ                    # 72: im2col K for both fused 3x3 convs
NJ_PAD = 2 * C6                # 16: joint-conv output rows (8 b2 + 6 h3b + 2 pad)
COUT = C12 + C6 + C4           # 24: final output channels

# row offsets of the packed weight matrix (all 8/16-aligned)
R_HX, R_HC, R_J, R_3 = 0, 16, 32, 48
WROWS = 64

HIGH = jax.lax.Precision.HIGHEST


# --------------------------------------------------------------------------
# Pallas kernel — one image per grid step, channel-major (C, HW) blocks
# --------------------------------------------------------------------------
def _kernel(x_ref, c_ref, w_ref, vec_ref, o_ref):
    x = x_ref[...]          # (32, 256)   NCHW channels of `x`
    cat = c_ref[...]        # (80, 256)   flattened (ci, kd) channels of cat_in

    # lane-position boundary masks for the 3x3 (stride-1, pad-1) convolutions
    pos = jax.lax.broadcasted_iota(jnp.int32, (1, HW), 1)
    colx = pos % W
    mask_l = colx != 0              # tap dx = -1 valid
    mask_r = colx != (W - 1)        # tap dx = +1 valid
    mask_u = pos >= W               # tap dy = -1 valid
    mask_d = pos < (HW - W)         # tap dy = +1 valid

    def im2col(f):
        # f: (8, HW) feature map -> (72, HW) im2col matrix, tap-major, so one
        # 3x3 conv becomes a single matmul.  Windows are lane rotations (XLU)
        # with boundary masks zeroing the wrapped / out-of-image positions.
        wins = []
        for ddy in (-1, 0, 1):
            for ddx in (-1, 0, 1):
                delta = ddy * W + ddx
                if delta == 0:
                    win = f
                else:
                    win = pltpu.roll(f, shift=(-delta) % HW, axis=1)
                m = None
                if ddy == -1:
                    m = mask_u
                elif ddy == 1:
                    m = mask_d
                if ddx == -1:
                    m = mask_l if m is None else jnp.logical_and(m, mask_l)
                elif ddx == 1:
                    m = mask_r if m is None else jnp.logical_and(m, mask_r)
                if m is not None:
                    win = jnp.where(m, win, 0.0)
                wins.append(win)
        return jnp.concatenate(wins, axis=0)          # (72, HW), 8-row aligned

    # --- fused 1x1 heads of all three branches (squish Conv3d folded in) ---
    # head rows: [h2 (0:4) | h3 (4:8) | b1 (8:12)]
    heads = jnp.maximum(
        jnp.dot(w_ref[R_HX:R_HX + NHEAD, 0:CX], x,
                preferred_element_type=jnp.float32)
        + jnp.dot(w_ref[R_HC:R_HC + NHEAD, 0:CSQ], cat,
                  preferred_element_type=jnp.float32)
        + vec_ref[0:NHEAD, 0:1],
        0.0)                                          # (12, 256)

    h23 = heads[0:CJ]                                 # (8, 256)  [h2 | h3]
    b1 = heads[CJ:NHEAD]                              # (4, 256)

    # --- branch-2 3x3 conv and branch-3 first 3x3 conv: one block-diag matmul
    conv_j = jnp.dot(w_ref[R_J:R_J + NJ_PAD, 0:KJ], im2col(h23),
                     preferred_element_type=jnp.float32)   # (16, 256)
    b2 = jnp.maximum(conv_j[0:C6], 0.0)               # (8, 256)
    h3p = jnp.maximum(conv_j[C6:NJ_PAD], 0.0)         # (8, 256); rows 6:8 == 0

    # --- branch-3 second 3x3 conv (weights for the 2 pad channels are zero) ---
    b3 = jnp.maximum(
        jnp.dot(w_ref[R_3:R_3 + C4, 0:KJ], im2col(h3p),
                preferred_element_type=jnp.float32),
        0.0)                                          # (12, 256)

    # --- single fused, lane-dense output store with folded BatchNorm ---
    out = jnp.concatenate([b1, b2, b3], axis=0)       # (24, 256)
    o_ref[...] = out * vec_ref[:, 1:2] + vec_ref[:, 2:3]
    # Dropout2d(p=0.0) == identity (nothing to do)


# --------------------------------------------------------------------------
# Parameter construction (PyTorch-shaped) and packing into kernel operands
# --------------------------------------------------------------------------
def make_params(key):
    ks = jax.random.split(key, 12)

    def rnd(k, shape, scale=0.1):
        return scale * jax.random.normal(k, shape, jnp.float32)

    def bn_p(k, c):
        k1, k2, k3, k4 = jax.random.split(k, 4)
        gamma = 1.0 + 0.1 * jax.random.normal(k1, (c,), jnp.float32)
        beta = 0.1 * jax.random.normal(k2, (c,), jnp.float32)
        mean = 0.1 * jax.random.normal(k3, (c,), jnp.float32)
        var = 1.0 + 0.5 * jax.random.uniform(k4, (c,), jnp.float32)
        return (gamma, beta, mean, var)

    return dict(
        w_squish=rnd(ks[0], (OUT_SIZE, OUT_SIZE, KD, 1, 1)),   # Conv3d (Co,Ci,kD,1,1)
        b_squish=rnd(ks[1], (OUT_SIZE,)),
        w1=rnd(ks[2], (IN_SIZE, C12, 1, 1)),                   # ConvT2d (Ci,Co,kh,kw)
        w2a=rnd(ks[3], (IN_SIZE, C12, 1, 1)),
        w2b=rnd(ks[4], (C12, C6, 3, 3)),
        w3a=rnd(ks[5], (IN_SIZE, C12, 1, 1)),
        w3b=rnd(ks[6], (C12, C8, 3, 3)),
        w3c=rnd(ks[7], (C8, C4, 3, 3)),
        bn1=bn_p(ks[8], C12), bn2=bn_p(ks[9], C6), bn3=bn_p(ks[10], C4),
    )


def pack_params(p):
    """Fold & pack the PyTorch-shaped parameters into two kernel operands."""
    w1 = p["w1"][:, :, 0, 0]                          # (48, 4)
    w2a = p["w2a"][:, :, 0, 0]
    w3a = p["w3a"][:, :, 0, 0]

    # fused 1x1 heads (channel-major: out = W^T @ comb); rows [h2 | h3 | b1]
    w_head = jnp.concatenate([w2a.T, w3a.T, w1.T], axis=0)        # (12, 48)
    w_head_x = w_head[:, :CX]                                     # (12, 32)
    w_head_s = w_head[:, CX:]                                     # (12, 16)

    # squish Conv3d(k=(5,1,1)) as a matrix over flattened (ci, kd): (16, 80)
    wsq = p["w_squish"][:, :, :, 0, 0].reshape(OUT_SIZE, CSQ)
    # fold squish into the fused 1x1 heads (purely linear composition)
    w_head_c = jnp.dot(w_head_s, wsq, precision=HIGH)             # (12, 80)
    b_head = jnp.dot(w_head_s, p["b_squish"], precision=HIGH)     # (12,)

    def taps_t(w):
        # ConvT2d(k=3,s=1,p=1) weight (Ci,Co,3,3) -> 9 correlation taps (Co,Ci)
        # in (ddy, ddx) order: K[ddy,ddx] = W[:, :, 1-ddy, 1-ddx].T
        return [w[:, :, 1 - ddy, 1 - ddx].T
                for ddy in (-1, 0, 1) for ddx in (-1, 0, 1)]

    k2, k3, k3c = taps_t(p["w2b"]), taps_t(p["w3b"]), taps_t(p["w3c"])

    # block-diagonal joint conv weight (16, 72): out rows 0:8 = b2, 8:14 = h3b,
    # 14:16 = zero padding; tap-t columns [t*8, t*8+4) act on h2, [t*8+4, t*8+8) on h3.
    w_cj = jnp.zeros((NJ_PAD, KJ), jnp.float32)
    # branch-3 second conv weight (12, 72) over the 8-padded h3b channels.
    w_c3 = jnp.zeros((C4, KJ), jnp.float32)
    for t in range(9):
        w_cj = w_cj.at[0:C6, t * CJ:t * CJ + C12].set(k2[t])
        w_cj = w_cj.at[C6:C6 + C8, t * CJ + C12:(t + 1) * CJ].set(k3[t])
        w_c3 = w_c3.at[:, t * CJ:t * CJ + C8].set(k3c[t])

    def bn_fold(gamma, beta, mean, var):
        s = gamma / jnp.sqrt(var + BN_EPS)
        return s, beta - mean * s

    s1, t1 = bn_fold(*p["bn1"])
    s2, t2 = bn_fold(*p["bn2"])
    s3, t3 = bn_fold(*p["bn3"])

    wmat = jnp.zeros((WROWS, CIN_K), jnp.float32)
    wmat = wmat.at[R_HX:R_HX + NHEAD, 0:CX].set(w_head_x)
    wmat = wmat.at[R_HC:R_HC + NHEAD, 0:CSQ].set(w_head_c)
    wmat = wmat.at[R_J:R_J + NJ_PAD, 0:KJ].set(w_cj)
    wmat = wmat.at[R_3:R_3 + C4, 0:KJ].set(w_c3)

    vecs = jnp.zeros((COUT, 3), jnp.float32)
    vecs = vecs.at[0:NHEAD, 0].set(b_head)
    vecs = vecs.at[:, 1].set(jnp.concatenate([s1, s2, s3]))
    vecs = vecs.at[:, 2].set(jnp.concatenate([t1, t2, t3]))
    return wmat, vecs


# --------------------------------------------------------------------------
# Pallas wrapper — no transposes, no concatenates: reshapes only
# --------------------------------------------------------------------------
@jax.jit
def revlb_forward(x_nchw, cat_ncdhw, wmat, vecs):
    x_k = x_nchw.reshape(N, CX, HW)                   # (N, 32, 256)
    cat_k = cat_ncdhw.reshape(N, CSQ, HW)             # (N, 80, 256) (ci, kd) order

    out = pl.pallas_call(
        _kernel,
        out_shape=jax.ShapeDtypeStruct((N, COUT, HW), jnp.float32),
        grid_spec=pltpu.PrefetchScalarGridSpec(
            num_scalar_prefetch=0,
            grid=(N,),
            in_specs=[
                pl.BlockSpec((None, CX, HW), lambda n: (n, 0, 0)),
                pl.BlockSpec((None, CSQ, HW), lambda n: (n, 0, 0)),
                pl.BlockSpec((WROWS, CIN_K), lambda n: (0, 0)),
                pl.BlockSpec((COUT, 3), lambda n: (0, 0)),
            ],
            out_specs=pl.BlockSpec((None, COUT, HW), lambda n: (n, 0, 0)),
        ),
        compiler_params=pltpu.CompilerParams(
            dimension_semantics=("parallel",)),   # one image per TC on v7x
    )(x_k, cat_k, wmat, vecs)

    return out.reshape(N, COUT, H, W)                 # already NCHW


# --------------------------------------------------------------------------
# Pure-JAX reference mirroring the original PyTorch composition (un-fused)
# --------------------------------------------------------------------------
def ref_forward(x_nchw, cat_ncdhw, p):
    sq = jnp.einsum("ncdhw,ocd->nohw", cat_ncdhw, p["w_squish"][:, :, :, 0, 0],
                    precision=HIGH) + p["b_squish"][None, :, None, None]
    comb = jnp.concatenate([x_nchw, sq], axis=1)                   # (N, 48, H, W)
    relu = lambda a: jnp.maximum(a, 0.0)

    def convT1x1(f, w):                                            # w: (Ci,Co,1,1)
        return jnp.einsum("nchw,cd->ndhw", f, w[:, :, 0, 0], precision=HIGH)

    def convT3x3(f, w):                                            # k=3, s=1, p=1
        fp = jnp.pad(f, ((0, 0), (0, 0), (1, 1), (1, 1)))
        out = 0.0
        for ky in range(3):
            for kx in range(3):
                out = out + jnp.einsum(
                    "nchw,cd->ndhw",
                    fp[:, :, 2 - ky:2 - ky + H, 2 - kx:2 - kx + W],
                    w[:, :, ky, kx], precision=HIGH)
        return out

    def bn(f, stats):
        gamma, beta, mean, var = stats
        inv = gamma / jnp.sqrt(var + BN_EPS)
        return ((f - mean[None, :, None, None]) * inv[None, :, None, None]
                + beta[None, :, None, None])

    b1 = bn(relu(convT1x1(comb, p["w1"])), p["bn1"])
    b2 = bn(relu(convT3x3(relu(convT1x1(comb, p["w2a"])), p["w2b"])), p["bn2"])
    h3 = relu(convT3x3(relu(convT1x1(comb, p["w3a"])), p["w3b"]))
    b3 = bn(relu(convT3x3(h3, p["w3c"])), p["bn3"])
    return jnp.concatenate([b1, b2, b3], axis=1)


if __name__ == "__main__":
    key = jax.random.PRNGKey(0)
    kx, kc, kp = jax.random.split(key, 3)
    x = jax.random.normal(kx, (N, CX, H, W), jnp.float32)
    cat_in = jax.random.normal(kc, (N, OUT_SIZE, KD, H, W), jnp.float32)
    params = make_params(kp)
    wmat, vecs = pack_params(params)

    out = jax.block_until_ready(revlb_forward(x, cat_in, wmat, vecs))
    ref = jax.block_until_ready(ref_forward(x, cat_in, params))

    assert out.shape == (N, COUT, H, W), out.shape
    if not jnp.allclose(out, ref, rtol=1e-4, atol=1e-4):
        raise AssertionError(
            f"mismatch: max abs err = {jnp.max(jnp.abs(out - ref))}")
    print("KERNEL_OK")
</pallas_src>

<mosaic_0001>
module attributes {stable_mosaic.version = 11 : i64} {
  func.func @_kernel(%arg0: i32, %arg1: memref<1x32x256xf32, #tpu.memory_space<vmem>>, %arg2: memref<1x80x256xf32, #tpu.memory_space<vmem>>, %arg3: memref<64x112xf32, #tpu.memory_space<vmem>>, %arg4: memref<24x3xf32, #tpu.memory_space<vmem>>, %arg5: memref<1x24x256xf32, #tpu.memory_space<vmem>>) attributes {dimension_semantics = [#tpu.dimension_semantics<parallel>], iteration_bounds = array<i64: 2>, scalar_prefetch = 0 : i64, scratch_operands = 0 : i64, tpu.core_type = #tpu.core_type<tc>, window_params = [{transform_indices = @transform_0, window_bounds = array<i64: 1, 32, 256>}, {transform_indices = @transform_1, window_bounds = array<i64: 1, 80, 256>}, {pipeline_mode = #tpu.pipeline_mode<synchronous>, transform_indices = @transform_2, window_bounds = array<i64: 64, 112>}, {pipeline_mode = #tpu.pipeline_mode<synchronous>, transform_indices = @transform_3, window_bounds = array<i64: 24, 3>}, {transform_indices = @transform_4, window_bounds = array<i64: 1, 24, 256>}]} {
    %c0 = arith.constant 0 : index
    %c0_0 = arith.constant 0 : index
    %c0_1 = arith.constant 0 : index
    %0 = vector.load %arg1[%c0, %c0_0, %c0_1] : memref<1x32x256xf32, #tpu.memory_space<vmem>>, vector<1x32x256xf32>
    %1 = vector.shape_cast %0 : vector<1x32x256xf32> to vector<32x256xf32>
    %c0_2 = arith.constant 0 : index
    %c0_3 = arith.constant 0 : index
    %c0_4 = arith.constant 0 : index
    %2 = vector.load %arg2[%c0_2, %c0_3, %c0_4] : memref<1x80x256xf32, #tpu.memory_space<vmem>>, vector<1x80x256xf32>
    %3 = vector.shape_cast %2 : vector<1x80x256xf32> to vector<80x256xf32>
    %4 = tpu.iota {dimensions = array<i32: 1>} : vector<1x256xi32>
    %c16_i32 = arith.constant 16 : i32
    %c0_i32 = arith.constant 0 : i32
    %5 = arith.cmpi eq, %c16_i32, %c0_i32 : i32
    %c1_i32 = arith.constant 1 : i32
    %6 = arith.select %5, %c1_i32, %c16_i32 : i32
    %7 = vector.broadcast %6 : i32 to vector<1x256xi32>
    %8 = arith.remsi %4, %7 : vector<1x256xi32>
    %c0_i32_5 = arith.constant 0 : i32
    %9 = vector.broadcast %c0_i32_5 : i32 to vector<1x256xi32>
    %10 = arith.cmpi ne, %8, %9 : vector<1x256xi32>
    %c0_i32_6 = arith.constant 0 : i32
    %11 = vector.broadcast %c0_i32_6 : i32 to vector<1x256xi32>
    %12 = arith.cmpi slt, %8, %11 : vector<1x256xi32>
    %c0_i32_7 = arith.constant 0 : i32
    %13 = arith.cmpi slt, %6, %c0_i32_7 : i32
    %14 = vector.broadcast %13 : i1 to vector<1x256xi1>
    %15 = vector.broadcast %14 : vector<1x256xi1> to vector<1x256xi1>
    %16 = arith.xori %12, %15 : vector<1x256xi1>
    %17 = arith.andi %16, %10 : vector<1x256xi1>
    %18 = vector.broadcast %6 : i32 to vector<1x256xi32>
    %19 = arith.addi %8, %18 : vector<1x256xi32>
    %20 = arith.select %17, %19, %8 : vector<1x256xi1>, vector<1x256xi32>
    %c0_i32_8 = arith.constant 0 : i32
    %21 = vector.broadcast %c0_i32_8 : i32 to vector<1x256xi32>
    %22 = arith.cmpi ne, %20, %21 : vector<1x256xi32>
    %c15_i32 = arith.constant 15 : i32
    %23 = vector.broadcast %c15_i32 : i32 to vector<1x256xi32>
    %24 = arith.cmpi ne, %20, %23 : vector<1x256xi32>
    %c16_i32_9 = arith.constant 16 : i32
    %25 = vector.broadcast %c16_i32_9 : i32 to vector<1x256xi32>
    %26 = arith.cmpi sge, %4, %25 : vector<1x256xi32>
    %c240_i32 = arith.constant 240 : i32
    %27 = vector.broadcast %c240_i32 : i32 to vector<1x256xi32>
    %28 = arith.cmpi slt, %4, %27 : vector<1x256xi32>
    %c0_10 = arith.constant 0 : index
    %c0_11 = arith.constant 0 : index
    %29 = vector.load %arg3[%c0_10, %c0_11] : memref<64x112xf32, #tpu.memory_space<vmem>>, vector<12x32xf32>
    %cst = arith.constant dense<0.000000e+00> : vector<12x256xf32>
    %30 = tpu.matmul %29, %1, %cst {dimension_numbers = #tpu.dot_dimension_numbers<[1], [0], [0], [1], [0, 0, 1, 1], [], []>} : vector<12x32xf32>, vector<32x256xf32>, vector<12x256xf32> -> vector<12x256xf32>
    %c16 = arith.constant 16 : index
    %c0_12 = arith.constant 0 : index
    %31 = vector.load %arg3[%c16, %c0_12] : memref<64x112xf32, #tpu.memory_space<vmem>>, vector<12x80xf32>
    %cst_13 = arith.constant dense<0.000000e+00> : vector<12x256xf32>
    %32 = tpu.matmul %31, %3, %cst_13 {dimension_numbers = #tpu.dot_dimension_numbers<[1], [0], [0], [1], [0, 0, 1, 1], [], []>} : vector<12x80xf32>, vector<80x256xf32>, vector<12x256xf32> -> vector<12x256xf32>
    %33 = arith.addf %30, %32 : vector<12x256xf32>
    %c0_14 = arith.constant 0 : index
    %c0_15 = arith.constant 0 : index
    %34 = vector.load %arg4[%c0_14, %c0_15] : memref<24x3xf32, #tpu.memory_space<vmem>>, vector<12x1xf32>
    %35 = vector.broadcast %34 : vector<12x1xf32> to vector<12x256xf32>
    %36 = arith.addf %33, %35 : vector<12x256xf32>
    %cst_16 = arith.constant 0.000000e+00 : f32
    %37 = vector.broadcast %cst_16 : f32 to vector<12x256xf32>
    %38 = arith.maximumf %36, %37 : vector<12x256xf32>
    %39 = vector.extract_strided_slice %38 {offsets = [0, 0], sizes = [8, 256], strides = [1, 1]} : vector<12x256xf32> to vector<8x256xf32>
    %40 = vector.extract_strided_slice %38 {offsets = [8, 0], sizes = [4, 256], strides = [1, 1]} : vector<12x256xf32> to vector<4x256xf32>
    %c32 = arith.constant 32 : index
    %c0_17 = arith.constant 0 : index
    %41 = vector.load %arg3[%c32, %c0_17] : memref<64x112xf32, #tpu.memory_space<vmem>>, vector<16x72xf32>
    %c17_i32 = arith.constant 17 : i32
    %42 = tpu.dynamic_rotate %39 by %c17_i32 dim 1 : vector<8x256xf32>, i32 -> vector<8x256xf32>
    %43 = arith.andi %26, %22 : vector<1x256xi1>
    %cst_18 = arith.constant 0.000000e+00 : f32
    %44 = vector.shape_cast %43 : vector<1x256xi1> to vector<1x256xi1>
    %45 = vector.broadcast %44 : vector<1x256xi1> to vector<8x256xi1>
    %46 = vector.broadcast %cst_18 : f32 to vector<8x256xf32>
    %47 = arith.select %45, %42, %46 : vector<8x256xi1>, vector<8x256xf32>
    %c16_i32_19 = arith.constant 16 : i32
    %48 = tpu.dynamic_rotate %39 by %c16_i32_19 dim 1 : vector<8x256xf32>, i32 -> vector<8x256xf32>
    %cst_20 = arith.constant 0.000000e+00 : f32
    %49 = vector.shape_cast %26 : vector<1x256xi1> to vector<1x256xi1>
    %50 = vector.broadcast %49 : vector<1x256xi1> to vector<8x256xi1>
    %51 = vector.broadcast %cst_20 : f32 to vector<8x256xf32>
    %52 = arith.select %50, %48, %51 : vector<8x256xi1>, vector<8x256xf32>
    %c15_i32_21 = arith.constant 15 : i32
    %53 = tpu.dynamic_rotate %39 by %c15_i32_21 dim 1 : vector<8x256xf32>, i32 -> vector<8x256xf32>
    %54 = arith.andi %26, %24 : vector<1x256xi1>
    %cst_22 = arith.constant 0.000000e+00 : f32
    %55 = vector.shape_cast %54 : vector<1x256xi1> to vector<1x256xi1>
    %56 = vector.broadcast %55 : vector<1x256xi1> to vector<8x256xi1>
    %57 = vector.broadcast %cst_22 : f32 to vector<8x256xf32>
    %58 = arith.select %56, %53, %57 : vector<8x256xi1>, vector<8x256xf32>
    %c1_i32_23 = arith.constant 1 : i32
    %59 = tpu.dynamic_rotate %39 by %c1_i32_23 dim 1 : vector<8x256xf32>, i32 -> vector<8x256xf32>
    %cst_24 = arith.constant 0.000000e+00 : f32
    %60 = vector.shape_cast %22 : vector<1x256xi1> to vector<1x256xi1>
    %61 = vector.broadcast %60 : vector<1x256xi1> to vector<8x256xi1>
    %62 = vector.broadcast %cst_24 : f32 to vector<8x256xf32>
    %63 = arith.select %61, %59, %62 : vector<8x256xi1>, vector<8x256xf32>
    %c255_i32 = arith.constant 255 : i32
    %64 = tpu.dynamic_rotate %39 by %c255_i32 dim 1 : vector<8x256xf32>, i32 -> vector<8x256xf32>
    %cst_25 = arith.constant 0.000000e+00 : f32
    %65 = vector.shape_cast %24 : vector<1x256xi1> to vector<1x256xi1>
    %66 = vector.broadcast %65 : vector<1x256xi1> to vector<8x256xi1>
    %67 = vector.broadcast %cst_25 : f32 to vector<8x256xf32>
    %68 = arith.select %66, %64, %67 : vector<8x256xi1>, vector<8x256xf32>
    %c241_i32 = arith.constant 241 : i32
    %69 = tpu.dynamic_rotate %39 by %c241_i32 dim 1 : vector<8x256xf32>, i32 -> vector<8x256xf32>
    %70 = arith.andi %28, %22 : vector<1x256xi1>
    %cst_26 = arith.constant 0.000000e+00 : f32
    %71 = vector.shape_cast %70 : vector<1x256xi1> to vector<1x256xi1>
    %72 = vector.broadcast %71 : vector<1x256xi1> to vector<8x256xi1>
    %73 = vector.broadcast %cst_26 : f32 to vector<8x256xf32>
    %74 = arith.select %72, %69, %73 : vector<8x256xi1>, vector<8x256xf32>
    %c240_i32_27 = arith.constant 240 : i32
    %75 = tpu.dynamic_rotate %39 by %c240_i32_27 dim 1 : vector<8x256xf32>, i32 -> vector<8x256xf32>
    %cst_28 = arith.constant 0.000000e+00 : f32
    %76 = vector.shape_cast %28 : vector<1x256xi1> to vector<1x256xi1>
    %77 = vector.broadcast %76 : vector<1x256xi1> to vector<8x256xi1>
    %78 = vector.broadcast %cst_28 : f32 to vector<8x256xf32>
    %79 = arith.select %77, %75, %78 : vector<8x256xi1>, vector<8x256xf32>
    %c239_i32 = arith.constant 239 : i32
    %80 = tpu.dynamic_rotate %39 by %c239_i32 dim 1 : vector<8x256xf32>, i32 -> vector<8x256xf32>
    %81 = arith.andi %28, %24 : vector<1x256xi1>
    %cst_29 = arith.constant 0.000000e+00 : f32
    %82 = vector.shape_cast %81 : vector<1x256xi1> to vector<1x256xi1>
    %83 = vector.broadcast %82 : vector<1x256xi1> to vector<8x256xi1>
    %84 = vector.broadcast %cst_29 : f32 to vector<8x256xf32>
    %85 = arith.select %83, %80, %84 : vector<8x256xi1>, vector<8x256xf32>
    %86 = tpu.concatenate %47, %52, %58, %63, %39, %68, %74, %79, %85 in 0 : vector<8x256xf32>, vector<8x256xf32>, vector<8x256xf32>, vector<8x256xf32>, vector<8x256xf32>, vector<8x256xf32>, vector<8x256xf32>, vector<8x256xf32>, vector<8x256xf32> -> vector<72x256xf32>
    %cst_30 = arith.constant dense<0.000000e+00> : vector<16x256xf32>
    %87 = tpu.matmul %41, %86, %cst_30 {dimension_numbers = #tpu.dot_dimension_numbers<[1], [0], [0], [1], [0, 0, 1, 1], [], []>} : vector<16x72xf32>, vector<72x256xf32>, vector<16x256xf32> -> vector<16x256xf32>
    %88 = vector.extract_strided_slice %87 {offsets = [0, 0], sizes = [8, 256], strides = [1, 1]} : vector<16x256xf32> to vector<8x256xf32>
    %cst_31 = arith.constant 0.000000e+00 : f32
    %89 = vector.broadcast %cst_31 : f32 to vector<8x256xf32>
    %90 = arith.maximumf %88, %89 : vector<8x256xf32>
    %91 = vector.extract_strided_slice %87 {offsets = [8, 0], sizes = [8, 256], strides = [1, 1]} : vector<16x256xf32> to vector<8x256xf32>
    %cst_32 = arith.constant 0.000000e+00 : f32
    %92 = vector.broadcast %cst_32 : f32 to vector<8x256xf32>
    %93 = arith.maximumf %91, %92 : vector<8x256xf32>
    %c48 = arith.constant 48 : index
    %c0_33 = arith.constant 0 : index
    %94 = vector.load %arg3[%c48, %c0_33] : memref<64x112xf32, #tpu.memory_space<vmem>>, vector<12x72xf32>
    %c17_i32_34 = arith.constant 17 : i32
    %95 = tpu.dynamic_rotate %93 by %c17_i32_34 dim 1 : vector<8x256xf32>, i32 -> vector<8x256xf32>
    %96 = arith.andi %26, %22 : vector<1x256xi1>
    %cst_35 = arith.constant 0.000000e+00 : f32
    %97 = vector.shape_cast %96 : vector<1x256xi1> to vector<1x256xi1>
    %98 = vector.broadcast %97 : vector<1x256xi1> to vector<8x256xi1>
    %99 = vector.broadcast %cst_35 : f32 to vector<8x256xf32>
    %100 = arith.select %98, %95, %99 : vector<8x256xi1>, vector<8x256xf32>
    %c16_i32_36 = arith.constant 16 : i32
    %101 = tpu.dynamic_rotate %93 by %c16_i32_36 dim 1 : vector<8x256xf32>, i32 -> vector<8x256xf32>
    %cst_37 = arith.constant 0.000000e+00 : f32
    %102 = vector.shape_cast %26 : vector<1x256xi1> to vector<1x256xi1>
    %103 = vector.broadcast %102 : vector<1x256xi1> to vector<8x256xi1>
    %104 = vector.broadcast %cst_37 : f32 to vector<8x256xf32>
    %105 = arith.select %103, %101, %104 : vector<8x256xi1>, vector<8x256xf32>
    %c15_i32_38 = arith.constant 15 : i32
    %106 = tpu.dynamic_rotate %93 by %c15_i32_38 dim 1 : vector<8x256xf32>, i32 -> vector<8x256xf32>
    %107 = arith.andi %26, %24 : vector<1x256xi1>
    %cst_39 = arith.constant 0.000000e+00 : f32
    %108 = vector.shape_cast %107 : vector<1x256xi1> to vector<1x256xi1>
    %109 = vector.broadcast %108 : vector<1x256xi1> to vector<8x256xi1>
    %110 = vector.broadcast %cst_39 : f32 to vector<8x256xf32>
    %111 = arith.select %109, %106, %110 : vector<8x256xi1>, vector<8x256xf32>
    %c1_i32_40 = arith.constant 1 : i32
    %112 = tpu.dynamic_rotate %93 by %c1_i32_40 dim 1 : vector<8x256xf32>, i32 -> vector<8x256xf32>
    %cst_41 = arith.constant 0.000000e+00 : f32
    %113 = vector.shape_cast %22 : vector<1x256xi1> to vector<1x256xi1>
    %114 = vector.broadcast %113 : vector<1x256xi1> to vector<8x256xi1>
    %115 = vector.broadcast %cst_41 : f32 to vector<8x256xf32>
    %116 = arith.select %114, %112, %115 : vector<8x256xi1>, vector<8x256xf32>
    %c255_i32_42 = arith.constant 255 : i32
    %117 = tpu.dynamic_rotate %93 by %c255_i32_42 dim 1 : vector<8x256xf32>, i32 -> vector<8x256xf32>
    %cst_43 = arith.constant 0.000000e+00 : f32
    %118 = vector.shape_cast %24 : vector<1x256xi1> to vector<1x256xi1>
    %119 = vector.broadcast %118 : vector<1x256xi1> to vector<8x256xi1>
    %120 = vector.broadcast %cst_43 : f32 to vector<8x256xf32>
    %121 = arith.select %119, %117, %120 : vector<8x256xi1>, vector<8x256xf32>
    %c241_i32_44 = arith.constant 241 : i32
    %122 = tpu.dynamic_rotate %93 by %c241_i32_44 dim 1 : vector<8x256xf32>, i32 -> vector<8x256xf32>
    %123 = arith.andi %28, %22 : vector<1x256xi1>
    %cst_45 = arith.constant 0.000000e+00 : f32
    %124 = vector.shape_cast %123 : vector<1x256xi1> to vector<1x256xi1>
    %125 = vector.broadcast %124 : vector<1x256xi1> to vector<8x256xi1>
    %126 = vector.broadcast %cst_45 : f32 to vector<8x256xf32>
    %127 = arith.select %125, %122, %126 : vector<8x256xi1>, vector<8x256xf32>
    %c240_i32_46 = arith.constant 240 : i32
    %128 = tpu.dynamic_rotate %93 by %c240_i32_46 dim 1 : vector<8x256xf32>, i32 -> vector<8x256xf32>
    %cst_47 = arith.constant 0.000000e+00 : f32
    %129 = vector.shape_cast %28 : vector<1x256xi1> to vector<1x256xi1>
    %130 = vector.broadcast %129 : vector<1x256xi1> to vector<8x256xi1>
    %131 = vector.broadcast %cst_47 : f32 to vector<8x256xf32>
    %132 = arith.select %130, %128, %131 : vector<8x256xi1>, vector<8x256xf32>
    %c239_i32_48 = arith.constant 239 : i32
    %133 = tpu.dynamic_rotate %93 by %c239_i32_48 dim 1 : vector<8x256xf32>, i32 -> vector<8x256xf32>
    %134 = arith.andi %28, %24 : vector<1x256xi1>
    %cst_49 = arith.constant 0.000000e+00 : f32
    %135 = vector.shape_cast %134 : vector<1x256xi1> to vector<1x256xi1>
    %136 = vector.broadcast %135 : vector<1x256xi1> to vector<8x256xi1>
    %137 = vector.broadcast %cst_49 : f32 to vector<8x256xf32>
    %138 = arith.select %136, %133, %137 : vector<8x256xi1>, vector<8x256xf32>
    %139 = tpu.concatenate %100, %105, %111, %116, %93, %121, %127, %132, %138 in 0 : vector<8x256xf32>, vector<8x256xf32>, vector<8x256xf32>, vector<8x256xf32>, vector<8x256xf32>, vector<8x256xf32>, vector<8x256xf32>, vector<8x256xf32>, vector<8x256xf32> -> vector<72x256xf32>
    %cst_50 = arith.constant dense<0.000000e+00> : vector<12x256xf32>
    %140 = tpu.matmul %94, %139, %cst_50 {dimension_numbers = #tpu.dot_dimension_numbers<[1], [0], [0], [1], [0, 0, 1, 1], [], []>} : vector<12x72xf32>, vector<72x256xf32>, vector<12x256xf32> -> vector<12x256xf32>
    %cst_51 = arith.constant 0.000000e+00 : f32
    %141 = vector.broadcast %cst_51 : f32 to vector<12x256xf32>
    %142 = arith.maximumf %140, %141 : vector<12x256xf32>
    %143 = tpu.concatenate %40, %90, %142 in 0 : vector<4x256xf32>, vector<8x256xf32>, vector<12x256xf32> -> vector<24x256xf32>
    %c0_52 = arith.constant 0 : index
    %c1 = arith.constant 1 : index
    %144 = vector.load %arg4[%c0_52, %c1] : memref<24x3xf32, #tpu.memory_space<vmem>>, vector<24x1xf32>
    %145 = vector.broadcast %144 : vector<24x1xf32> to vector<24x256xf32>
    %146 = arith.mulf %143, %145 : vector<24x256xf32>
    %c0_53 = arith.constant 0 : index
    %c2 = arith.constant 2 : index
    %147 = vector.load %arg4[%c0_53, %c2] : memref<24x3xf32, #tpu.memory_space<vmem>>, vector<24x1xf32>
    %148 = vector.broadcast %147 : vector<24x1xf32> to vector<24x256xf32>
    %149 = arith.addf %146, %148 : vector<24x256xf32>
    %c0_54 = arith.constant 0 : index
    %c0_55 = arith.constant 0 : index
    %c0_56 = arith.constant 0 : index
    %150 = vector.load %arg5[%c0_54, %c0_55, %c0_56] : memref<1x24x256xf32, #tpu.memory_space<vmem>>, vector<1x24x256xf32>
    %151 = vector.shape_cast %150 : vector<1x24x256xf32> to vector<24x256xf32>
    %152 = vector.shape_cast %149 : vector<24x256xf32> to vector<1x24x256xf32>
    tpu.vector_store %arg5[%c0_54, %c0_55, %c0_56], %152 {strides = array<i32>} : memref<1x24x256xf32, #tpu.memory_space<vmem>>, vector<1x24x256xf32>,
    return
  }
  func.func @transform_0(%arg0: i32) -> (i32, i32, i32) {
    %c0_i32 = arith.constant 0 : i32
    %c0_i32_0 = arith.constant 0 : i32
    %c0_i32_1 = arith.constant 0 : i32
    return %arg0, %c0_i32, %c0_i32_0 : i32, i32, i32
  }
  func.func @transform_1(%arg0: i32) -> (i32, i32, i32) {
    %c0_i32 = arith.constant 0 : i32
    %c0_i32_0 = arith.constant 0 : i32
    %c0_i32_1 = arith.constant 0 : i32
    return %arg0, %c0_i32, %c0_i32_0 : i32, i32, i32
  }
  func.func @transform_2(%arg0: i32) -> (i32, i32) {
    %c0_i32 = arith.constant 0 : i32
    %c0_i32_0 = arith.constant 0 : i32
    %c0_i32_1 = arith.constant 0 : i32
    return %c0_i32, %c0_i32_0 : i32, i32
  }
  func.func @transform_3(%arg0: i32) -> (i32, i32) {
    %c0_i32 = arith.constant 0 : i32
    %c0_i32_0 = arith.constant 0 : i32
    %c0_i32_1 = arith.constant 0 : i32
    return %c0_i32, %c0_i32_0 : i32, i32
  }
  func.func @transform_4(%arg0: i32) -> (i32, i32, i32) {
    %c0_i32 = arith.constant 0 : i32
    %c0_i32_0 = arith.constant 0 : i32
    %c0_i32_1 = arith.constant 0 : i32
    return %arg0, %c0_i32, %c0_i32_0 : i32, i32, i32
  }
}

</mosaic_0001>

<llo_original>
// kernel: revlb_forward.1
$region0: #{revlb_forward.1}
  #allocation0 [shape = 'u32[]', space=smem, size = 0x4, offset = 0x4, fixed_abs, tag = 'smem constant byte address 0x4 - core index']
  #allocation1 [shape = 'u32[72,128]{1,0:T(1,128)}', space=vmem, size = 0x9000, scoped, tag = 'internal scratch']
  %s0 = inlined_call_operand.vmem [shape: f32[2,32,256], index: 0, kind: input, shape index: {}]
  %s1 = inlined_call_operand.vmem [shape: f32[2,80,256], index: 1, kind: input, shape index: {}]
  %s2 = inlined_call_operand.vmem [shape: f32[64,112], index: 2, kind: input, shape index: {}]
  %s3 = inlined_call_operand.vmem [shape: f32[24,3], index: 3, kind: input, shape index: {}]
  %s4 = inlined_call_operand.vmem [shape: f32[2,24,256], index: 4, kind: output, shape index: {}]
  %s5 = sld [smem:[#allocation0]]
  $region49: #{revlb_forward.1} parent=0
    _
  %s7 = ssub.s32 1, %s5
  %s8 = scalar_select 0, %s7, %s5
  loop: start=0, step=1, limit=4
  $region2: #{revlb_forward.1} parent=0 // loop_pre_header
    _
  $region3: #{revlb_forward.1} parent=0 // loop_header
    %s10 = sphi 0, %s14
    %p11 = scmp.ge.s32.totalorder %s10, 4
    %s20 = sphi 0, %s22
    %s23 = sphi 0, %s20
    %s24 = sphi 0, %s23
    %s40 = sphi 0, %s24
    %s46 = sphi 0, %s48
    %s49 = sphi 0, %s46
    %s50 = sphi 0, %s49
    %s66 = sphi 0, %s50
    %s70 = sphi 0, %s70
    %s72 = sphi 0, %s70
    %s73 = sphi 0, %s72
    %s87 = sphi 0, %s73
    %s91 = sphi 0, %s91
    %s93 = sphi 0, %s91
    %s94 = sphi 0, %s93
    %s108 = sphi 0, %s94
    %s114 = sphi 0, %s116
    %s117 = sphi 0, %s114
    %s118 = sphi 0, %s117
    %s134 = sphi 0, %s118
  $region4: #{revlb_forward.1} parent=0 // loop_header_branch
    %13 = sbr.rel (%p11) target = $region8
  $region5: #{revlb_forward.1} parent=0 // loop_body
    %s15 = ssub.s32 %s10, 1
    %s16 = ssub.s32 %s10, 2
    %s17 = sadd.s32 %s10, 1
    %s18 = ssub.s32 %s10, %s17
    %p19 = scmp.eq.s32.totalorder %s18, 0
    %s21 = sadd.s32 %s20, 1
    %s22 = scalar_select %p19, %s20, %s21
    %p25 = pneg %p19
    %p26 = scmp.eq.s32.totalorder %s10, 1
    %p27 = por %p25, %p26
    %p28 = scmp.ne.s32.totalorder %s20, %s23
    %p29 = scmp.eq.s32.totalorder %s10, 0
    %p30 = por %p28, %p29
    %p31 = scmp.ne.s32.totalorder %s20, %s23
    %p32 = scmp.eq.s32.totalorder %s15, 1
    %p33 = por %p31, %p32
    %p34 = scmp.ne.s32.totalorder %s23, %s24
    %p35 = scmp.eq.s32.totalorder %s15, 0
    %p36 = por %p34, %p35
    %p37 = scmp.ne.s32.totalorder %s23, %s24
    %p38 = scmp.eq.s32.totalorder %s16, 1
    %p39 = por %p37, %p38
    %p41 = scmp.ne.s32.totalorder %s24, %s40
    %p42 = scmp.eq.s32.totalorder %s16, 0
    %p43 = por %p41, %p42
    %s44 = ssub.s32 %s10, %s17
    %p45 = scmp.eq.s32.totalorder %s44, 0
    %s47 = sadd.s32 %s46, 1
    %s48 = scalar_select %p45, %s46, %s47
    %p51 = pneg %p45
    %p52 = scmp.eq.s32.totalorder %s10, 1
    %p53 = por %p51, %p52
    %p54 = scmp.ne.s32.totalorder %s46, %s49
    %p55 = scmp.eq.s32.totalorder %s10, 0
    %p56 = por %p54, %p55
    %p57 = scmp.ne.s32.totalorder %s46, %s49
    %p58 = scmp.eq.s32.totalorder %s15, 1
    %p59 = por %p57, %p58
    %p60 = scmp.ne.s32.totalorder %s49, %s50
    %p61 = scmp.eq.s32.totalorder %s15, 0
    %p62 = por %p60, %p61
    %p63 = scmp.ne.s32.totalorder %s49, %s50
    %p64 = scmp.eq.s32.totalorder %s16, 1
    %p65 = por %p63, %p64
    %p67 = scmp.ne.s32.totalorder %s50, %s66
    %p68 = scmp.eq.s32.totalorder %s16, 0
    %p69 = por %p67, %p68
    %s71 = sadd.s32 %s70, 1
    %p74 = scmp.eq.s32.totalorder %s10, 1
    %p75 = scmp.ne.s32.totalorder %s70, %s72
    %p76 = scmp.eq.s32.totalorder %s10, 0
    %p77 = por %p75, %p76
    %p78 = scmp.ne.s32.totalorder %s70, %s72
    %p79 = scmp.eq.s32.totalorder %s15, 1
    %p80 = por %p78, %p79
    %p81 = scmp.ne.s32.totalorder %s72, %s73
    %p82 = scmp.eq.s32.totalorder %s15, 0
    %p83 = por %p81, %p82
    %p84 = scmp.ne.s32.totalorder %s72, %s73
    %p85 = scmp.eq.s32.totalorder %s16, 1
    %p86 = por %p84, %p85
    %p88 = scmp.ne.s32.totalorder %s73, %s87
    %p89 = scmp.eq.s32.totalorder %s16, 0
    %p90 = por %p88, %p89
    %s92 = sadd.s32 %s91, 1
    %p95 = scmp.eq.s32.totalorder %s10, 1
    %p96 = scmp.ne.s32.totalorder %s91, %s93
    %p97 = scmp.eq.s32.totalorder %s10, 0
    %p98 = por %p96, %p97
    %p99 = scmp.ne.s32.totalorder %s91, %s93
    %p100 = scmp.eq.s32.totalorder %s15, 1
    %p101 = por %p99, %p100
    %p102 = scmp.ne.s32.totalorder %s93, %s94
    %p103 = scmp.eq.s32.totalorder %s15, 0
    %p104 = por %p102, %p103
    %p105 = scmp.ne.s32.totalorder %s93, %s94
    %p106 = scmp.eq.s32.totalorder %s16, 1
    %p107 = por %p105, %p106
    %p109 = scmp.ne.s32.totalorder %s94, %s108
    %p110 = scmp.eq.s32.totalorder %s16, 0
    %p111 = por %p109, %p110
    %s112 = ssub.s32 %s10, %s17
    %p113 = scmp.eq.s32.totalorder %s112, 0
    %s115 = sadd.s32 %s114, 1
    %s116 = scalar_select %p113, %s114, %s115
    %p119 = pneg %p113
    %p120 = scmp.eq.s32.totalorder %s10, 1
    %p121 = por %p119, %p120
    %p122 = scmp.ne.s32.totalorder %s114, %s117
    %p123 = scmp.eq.s32.totalorder %s10, 0
    %p124 = por %p122, %p123
    %p125 = scmp.ne.s32.totalorder %s114, %s117
    %p126 = scmp.eq.s32.totalorder %s15, 1
    %p127 = por %p125, %p126
    %p128 = scmp.ne.s32.totalorder %s117, %s118
    %p129 = scmp.eq.s32.totalorder %s15, 0
    %p130 = por %p128, %p129
    %p131 = scmp.ne.s32.totalorder %s117, %s118
    %p132 = scmp.eq.s32.totalorder %s16, 1
    %p133 = por %p131, %p132
    %p135 = scmp.ne.s32.totalorder %s118, %s134
    %p136 = scmp.eq.s32.totalorder %s16, 0
    %p137 = por %p135, %p136
    %p138 = scmp.le.s32.totalorder 1, %s10
    %p139 = scmp.lt.s32.totalorder %s10, 3
    %p140 = pnand %p138, %p139
    %p141 = pneg %p140
    // Predicated region
    $region9: #{revlb_forward.1} parent=5 // pred_check
      _
    $region10: #{revlb_forward.1} parent=5 // pred_check_branch
      %143 = sbr.rel (%p140) target = $region12
    $region11: #{revlb_forward.1} parent=5 // pred_region
      %s144 = ssub.s32 %s10, 1
      // Predicated region
      $region13: #{revlb_forward.1} parent=11 // pred_check
        %p145 = pneg %p83
      $region14: #{revlb_forward.1} parent=11 // pred_check_branch
        %147 = sbr.rel (%p145) target = $region16
      $region15: #{revlb_forward.1} parent=11 // pred_region
        _
      $region16: #{revlb_forward.1} parent=11 // pred_fallthru
        _
      // Predicated region
      $region17: #{revlb_forward.1} parent=11 // pred_check
        %p148 = pneg %p104
      $region18: #{revlb_forward.1} parent=11 // pred_check_branch
        %150 = sbr.rel (%p148) target = $region20
      $region19: #{revlb_forward.1} parent=11 // pred_region
        _
      $region20: #{revlb_forward.1} parent=11 // pred_fallthru
        _
    $region12: #{revlb_forward.1} parent=5 // pred_fallthru
      _
    %p151 = scmp.lt.s32.totalorder %s10, 2
    // Predicated region
    $region21: #{revlb_forward.1} parent=5 // pred_check
      %p152 = pneg %p151
    $region22: #{revlb_forward.1} parent=5 // pred_check_branch
      %154 = sbr.rel (%p152) target = $region24
    $region23: #{revlb_forward.1} parent=5 // pred_region
      // Predicated region
      $region25: #{revlb_forward.1} parent=23 // pred_check
        %p155 = pneg %p30
      $region26: #{revlb_forward.1} parent=23 // pred_check_branch
        %157 = sbr.rel (%p155) target = $region28
      $region27: #{revlb_forward.1} parent=23 // pred_region
        %p158 = scmp.lt.s32.totalorder %s10, 1
        %s159 = scalar_select %p158, %s10, 1
        %s160 = smul.addr %s159, 8
        %s161 = smul.addr %s160, 8
        %s162 = scalar_lea.vmem %s0, %s161
      $region28: #{revlb_forward.1} parent=23 // pred_fallthru
        _
      // Predicated region
      $region29: #{revlb_forward.1} parent=23 // pred_check
        %p163 = pneg %p56
      $region30: #{revlb_forward.1} parent=23 // pred_check_branch
        %165 = sbr.rel (%p163) target = $region32
      $region31: #{revlb_forward.1} parent=23 // pred_region
        %p166 = scmp.lt.s32.totalorder %s10, 1
        %s167 = scalar_select %p166, %s10, 1
        %s168 = smul.addr %s167, 20
        %s169 = smul.addr %s168, 8
        %s170 = scalar_lea.vmem %s1, %s169
      $region32: #{revlb_forward.1} parent=23 // pred_fallthru
        _
    $region24: #{revlb_forward.1} parent=5 // pred_fallthru
      _
    %p171 = scmp.le.s32.totalorder 1, %s10
    %p172 = scmp.lt.s32.totalorder %s10, 3
    %p173 = pnand %p171, %p172
    %p174 = pneg %p173
    // Predicated region
    $region33: #{revlb_forward.1} parent=5 // pred_check
      _
    $region34: #{revlb_forward.1} parent=5 // pred_check_branch
      %176 = sbr.rel (%p173) target = $region36
    $region35: #{revlb_forward.1} parent=5 // pred_region
      %s177 = ssub.s32 %s10, 1
      %p178 = scmp.lt.s32.totalorder %s15, 1
      %s179 = scalar_select %p178, %s15, 1
      %s180 = smul.addr %s179, 8
      %s181 = smul.addr %s180, 8
      %s182 = scalar_lea.vmem %s0, %s181
      %p183 = pneg %p36
      %p184 = pneg %p33
      %p185 = scmp.lt.s32.totalorder %s15, 1
      %s186 = scalar_select %p185, %s15, 1
      %s187 = smul.addr %s186, 20
      %s188 = smul.addr %s187, 8
      %s189 = scalar_lea.vmem %s1, %s188
      %p190 = pneg %p62
      %p191 = pneg %p59
      %p192 = pneg %p83
      %p193 = pneg %p80
      %p194 = pneg %p104
      %p195 = pneg %p101
      %p196 = pneg %p130
      %p197 = pneg %p127
      %p198 = scmp.lt.s32.totalorder %s15, 1
      %s199 = scalar_select %p198, %s15, 1
      %s200 = smul.addr %s199, 6
      %s201 = smul.addr %s200, 8
      %s202 = scalar_lea.vmem %s4, %s201
      %p203 = scmp.lt.s32.totalorder %s15, 1
      %s204 = scalar_select %p203, %s15, 1
      %s205 = smul.addr %s204, 8
      %s206 = smul.addr %s205, 8
      %s207 = scalar_lea.vmem %s0, %s206
      %p208 = scmp.lt.s32.totalorder %s15, 1
      %s209 = scalar_select %p208, %s15, 1
      %s210 = smul.addr %s209, 20
      %s211 = smul.addr %s210, 8
      %s212 = scalar_lea.vmem %s1, %s211
      %p213 = scmp.lt.s32.totalorder %s15, 1
      %s214 = scalar_select %p213, %s15, 1
      %s215 = smul.addr %s214, 6
      %s216 = smul.addr %s215, 8
      %s217 = scalar_lea.vmem %s4, %s216
      %v218 = vld [vmem:[%s207] sm:$0xff]
      %v219 = vld [vmem:[%s207 + $0x8] sm:$0xff]
      %v220 = vld [vmem:[%s207 + $0x10] sm:$0xff]
      %v221 = vld [vmem:[%s207 + $0x18] sm:$0xff]
      %v222 = vld [vmem:[%s207 + $0x20] sm:$0xff]
      %v223 = vld [vmem:[%s207 + $0x28] sm:$0xff]
      %v224 = vld [vmem:[%s207 + $0x30] sm:$0xff]
      %v225 = vld [vmem:[%s207 + $0x38] sm:$0xff]
      %v226 = vld [vmem:[%s212] sm:$0xff]
      %v227 = vld [vmem:[%s212 + $0x8] sm:$0xff]
      %v228 = vld [vmem:[%s212 + $0x10] sm:$0xff]
      %v229 = vld [vmem:[%s212 + $0x18] sm:$0xff]
      %v230 = vld [vmem:[%s212 + $0x20] sm:$0xff]
      %v231 = vld [vmem:[%s212 + $0x28] sm:$0xff]
      %v232 = vld [vmem:[%s212 + $0x30] sm:$0xff]
      %v233 = vld [vmem:[%s212 + $0x38] sm:$0xff]
      %v234 = vld [vmem:[%s212 + $0x40] sm:$0xff]
      %v235 = vld [vmem:[%s212 + $0x48] sm:$0xff]
      %v236 = vld [vmem:[%s212 + $0x50] sm:$0xff]
      %v237 = vld [vmem:[%s212 + $0x58] sm:$0xff]
      %v238 = vld [vmem:[%s212 + $0x60] sm:$0xff]
      %v239 = vld [vmem:[%s212 + $0x68] sm:$0xff]
      %v240 = vld [vmem:[%s212 + $0x70] sm:$0xff]
      %v241 = vld [vmem:[%s212 + $0x78] sm:$0xff]
      %v242 = vld [vmem:[%s212 + $0x80] sm:$0xff]
      %v243 = vld [vmem:[%s212 + $0x88] sm:$0xff]
      %v244 = vld [vmem:[%s212 + $0x90] sm:$0xff]
      %v245 = vld [vmem:[%s212 + $0x98] sm:$0xff]
      %v246 = vlaneseq
      %v247 = vand.u32 %v246, 127
      %v248 = vadd.s32 %v247, 128
      %vm249 = vcmp.lt.s32.totalorder %v247, 0
      %v250 = vsub.s32 0, %v247
      %v251 = vsel %vm249, %v250, %v247
      %v252 = vshrl.u32 %v251, 4
      %v253 = vand.u32 %v251, 15
      %v254 = vsub.s32 0, %v253
      %v255 = vsel %vm249, %v254, %v253
      %vm256 = vcmp.lt.s32.totalorder %v248, 0
      %v257 = vsub.s32 0, %v248
      %v258 = vsel %vm256, %v257, %v248
      %v259 = vshrl.u32 %v258, 4
      %v260 = vand.u32 %v258, 15
      %v261 = vsub.s32 0, %v260
      %v262 = vsel %vm256, %v261, %v260
      %vm263 = vcmp.ne.s32.totalorder %v255, 0
      %vm264 = vcmp.ne.s32.totalorder %v262, 0
      %vm265 = vcmp.lt.s32.totalorder %v255, 0
      %vm266 = vcmp.lt.s32.totalorder %v262, 0
      %vm267 = vmand %vm265, %vm263
      %vm268 = vmand %vm266, %vm264
      %v269 = vadd.s32 %v255, 16
      %v270 = vadd.s32 %v262, 16
      %v271 = vsel %vm267, %v269, %v255
      %v272 = vsel %vm268, %v270, %v262
      %vm273 = vcmp.ne.s32.totalorder %v271, 0
      %vm274 = vcmp.ne.s32.totalorder %v272, 0
      %vm275 = vcmp.ne.s32.totalorder %v271, 15
      %vm276 = vcmp.ne.s32.totalorder %v272, 15
      %vm277 = vcmp.ge.s32.totalorder %v247, 16
      %vm278 = vcmp.ge.s32.totalorder %v248, 16
      %vm279 = vcmp.lt.s32.totalorder %v247, 240
      %vm280 = vcmp.lt.s32.totalorder %v248, 240
      %v281 = vld [vmem:[%s2] sm:$0xff]
      %v282 = vld [vmem:[%s2 + $0x8] sm:$0xf]
      %v283 = vld [vmem:[%s2 + $0x10] sm:$0xff]
      %v284 = vld [vmem:[%s2 + $0x18] sm:$0xf]
      %vm285 = vcmask 654336
      %v287 = vsel %vm285, %v283, 0
      %v290 = vsel %vm285, %v284, 0
      %292 = vmatpush.msra.mxu0 0.0
      %293 = vmatpush.msra.mxu0 0.0
      %294 = vmatpush.msra.mxu0 0.0
      %295 = vmatpush.msra.mxu0 0.0
      %296 = vmatpush.msra.mxu0 0.0
      %297 = vmatpush.msra.mxu0 0.0
      %298 = vmatpush.msra.mxu0 %v244
      %299 = vmatpush.msra.mxu0 %v242
      %300 = vmatpush.msra.mxu0 %v240
      %301 = vmatpush.msra.mxu0 %v238
      %302 = vmatpush.msra.mxu0 %v236
      %303 = vmatpush.msra.mxu0 %v234
      %304 = vmatpush.msra.mxu0 %v232
      %305 = vmatpush.msra.mxu0 %v230
      %306 = vmatpush.msra.mxu0 %v228
      %307 = vmatpush.msra.mxu0 %v226
      %308 = vmatmul.f32.gmra.mxu0 %v287
      %v309 = vpop.f32.mrf.mxu0
      %v310 = vadd.f32 0.0, %v309
      %311 = vmatmul.f32.gmra.mxu0 %v290
      %v312 = vpop.f32.mrf.mxu0
      %v313 = vadd.f32 0.0, %v312
      %314 = vdwg.mxu0
      %315 = vmatpush.msra.mxu0 0.0
      %316 = vmatpush.msra.mxu0 0.0
      %317 = vmatpush.msra.mxu0 0.0
      %318 = vmatpush.msra.mxu0 0.0
      %319 = vmatpush.msra.mxu0 0.0
      %320 = vmatpush.msra.mxu0 0.0
      %321 = vmatpush.msra.mxu0 %v245
      %322 = vmatpush.msra.mxu0 %v243
      %323 = vmatpush.msra.mxu0 %v241
      %324 = vmatpush.msra.mxu0 %v239
      %325 = vmatpush.msra.mxu0 %v237
      %326 = vmatpush.msra.mxu0 %v235
      %327 = vmatpush.msra.mxu0 %v233
      %328 = vmatpush.msra.mxu0 %v231
      %329 = vmatpush.msra.mxu0 %v229
      %330 = vmatpush.msra.mxu0 %v227
      %331 = vmatmul.f32.gmra.mxu0 %v287
      %v332 = vpop.f32.mrf.mxu0
      %v333 = vadd.f32 0.0, %v332
      %334 = vmatmul.f32.gmra.mxu0 %v290
      %v335 = vpop.f32.mrf.mxu0
      %v336 = vadd.f32 0.0, %v335
      %337 = vdwg.mxu0
      %vm338 = vcmask 261120
      %v340 = vsel %vm338, %v281, 0
      %v343 = vsel %vm338, %v282, 0
      %345 = vmatpush.msra.mxu0 0.0
      %346 = vmatpush.msra.mxu0 0.0
      %347 = vmatpush.msra.mxu0 0.0
      %348 = vmatpush.msra.mxu0 0.0
      %349 = vmatpush.msra.mxu0 0.0
      %350 = vmatpush.msra.mxu0 0.0
      %351 = vmatpush.msra.mxu0 0.0
      %352 = vmatpush.msra.mxu0 0.0
      %353 = vmatpush.msra.mxu0 0.0
      %354 = vmatpush.msra.mxu0 0.0
      %355 = vmatpush.msra.mxu0 0.0
      %356 = vmatpush.msra.mxu0 0.0
      %357 = vmatpush.msra.mxu0 %v224
      %358 = vmatpush.msra.mxu0 %v222
      %359 = vmatpush.msra.mxu0 %v220
      %360 = vmatpush.msra.mxu0 %v218
      %361 = vmatmul.f32.gmra.mxu0 %v340
      %v362 = vpop.f32.mrf.mxu0
      %v363 = vadd.f32 %v310, %v362
      %364 = vmatmul.f32.gmra.mxu0 %v343
      %v365 = vpop.f32.mrf.mxu0
      %v366 = vadd.f32 %v313, %v365
      %367 = vdwg.mxu0
      %368 = vmatpush.msra.mxu0 0.0
      %369 = vmatpush.msra.mxu0 0.0
      %370 = vmatpush.msra.mxu0 0.0
      %371 = vmatpush.msra.mxu0 0.0
      %372 = vmatpush.msra.mxu0 0.0
      %373 = vmatpush.msra.mxu0 0.0
      %374 = vmatpush.msra.mxu0 0.0
      %375 = vmatpush.msra.mxu0 0.0
      %376 = vmatpush.msra.mxu0 0.0
      %377 = vmatpush.msra.mxu0 0.0
      %378 = vmatpush.msra.mxu0 0.0
      %379 = vmatpush.msra.mxu0 0.0
      %380 = vmatpush.msra.mxu0 %v225
      %381 = vmatpush.msra.mxu0 %v223
      %382 = vmatpush.msra.mxu0 %v221
      %383 = vmatpush.msra.mxu0 %v219
      %384 = vmatmul.f32.gmra.mxu0 %v340
      %v385 = vpop.f32.mrf.mxu0
      %v386 = vadd.f32 %v333, %v385
      %387 = vmatmul.f32.gmra.mxu0 %v343
      %v388 = vpop.f32.mrf.mxu0
      %v389 = vadd.f32 %v336, %v388
      %390 = vdwg.mxu0
      %v391 = vld [vmem:[%s3] sm:$0xff]
      %v392 = vld [vmem:[%s3 + $0x8] sm:$0xf]
      %394 = vset.pattern.permute.xlu0 0
      %395 = vperm.xlu0 %394, %v391
      %v396 = vpop.permute.xlu0 %395
      %399 = vset.pattern.permute.xlu0 0
      %400 = vperm.xlu0 %399, %v392
      %v401 = vpop.permute.xlu0 %400
      %v403 = vadd.f32 %v363, %v396
      %v404 = vadd.f32 %v386, %v396
      %v405 = vadd.f32 %v366, %v401
      %v406 = vadd.f32 %v389, %v401
      %v407 = vmax.f32 %v403, 0.0
      %v408 = vmax.f32 %v404, 0.0
      %v409 = vmax.f32 %v405, 0.0
      %v410 = vmax.f32 %v406, 0.0
      %v411 = vld [vmem:[%s2 + $0x20] sm:$0xff]
      %v412 = vld [vmem:[%s2 + $0x28] sm:$0xff]
      %413 = vrot.lane.b32.xlu0 %v407, 17
      %v414 = vpop.permute.xlu0 %413
      %415 = vrot.lane.b32.xlu0 %v408, 17
      %v416 = vpop.permute.xlu0 %415
      %vm417 = vcmp.lt.s32.totalorder %v247, 17
      %v418 = vsel %vm417, %v414, %v416
      %v419 = vsel %vm417, %v416, %v414
      %vm420 = vmand %vm277, %vm273
      %vm421 = vmand %vm278, %vm274
      %v422 = vsel %vm420, 1, 0
      %v423 = vsel %vm421, 1, 0
      %vm424 = vcmp.eq.s32.totalorder %v422, 1
      %vm425 = vcmp.eq.s32.totalorder %v423, 1
      %v426 = vsel %vm424, %v419, 0.0
      %v427 = vsel %vm425, %v418, 0.0
      %428 = vrot.lane.b32.xlu0 %v407, 16
      %v429 = vpop.permute.xlu0 %428
      %430 = vrot.lane.b32.xlu0 %v408, 16
      %v431 = vpop.permute.xlu0 %430
      %vm432 = vcmp.lt.s32.totalorder %v247, 16
      %v433 = vsel %vm432, %v429, %v431
      %v434 = vsel %vm432, %v431, %v429
      %v435 = vsel %vm277, 1, 0
      %v436 = vsel %vm278, 1, 0
      %vm437 = vcmp.eq.s32.totalorder %v435, 1
      %vm438 = vcmp.eq.s32.totalorder %v436, 1
      %v439 = vsel %vm437, %v434, 0.0
      %v440 = vsel %vm438, %v433, 0.0
      %441 = vrot.lane.b32.xlu0 %v407, 15
      %v442 = vpop.permute.xlu0 %441
      %443 = vrot.lane.b32.xlu0 %v408, 15
      %v444 = vpop.permute.xlu0 %443
      %vm445 = vcmp.lt.s32.totalorder %v247, 15
      %v446 = vsel %vm445, %v442, %v444
      %v447 = vsel %vm445, %v444, %v442
      %vm448 = vmand %vm277, %vm275
      %vm449 = vmand %vm278, %vm276
      %v450 = vsel %vm448, 1, 0
      %v451 = vsel %vm449, 1, 0
      %vm452 = vcmp.eq.s32.totalorder %v450, 1
      %vm453 = vcmp.eq.s32.totalorder %v451, 1
      %v454 = vsel %vm452, %v447, 0.0
      %v455 = vsel %vm453, %v446, 0.0
      %456 = vrot.lane.b32.xlu0 %v407, 1
      %v457 = vpop.permute.xlu0 %456
      %458 = vrot.lane.b32.xlu0 %v408, 1
      %v459 = vpop.permute.xlu0 %458
      %vm460 = vcmp.lt.s32.totalorder %v247, 1
      %v461 = vsel %vm460, %v457, %v459
      %v462 = vsel %vm460, %v459, %v457
      %v463 = vsel %vm273, 1, 0
      %v464 = vsel %vm274, 1, 0
      %vm465 = vcmp.eq.s32.totalorder %v463, 1
      %vm466 = vcmp.eq.s32.totalorder %v464, 1
      %v467 = vsel %vm465, %v462, 0.0
      %v468 = vsel %vm466, %v461, 0.0
      %469 = vrot.lane.b32.xlu0 %v407, 127
      %v470 = vpop.permute.xlu0 %469
      %471 = vrot.lane.b32.xlu0 %v408, 127
      %v472 = vpop.permute.xlu0 %471
      %vm473 = vcmp.lt.s32.totalorder %v247, 127
      %v474 = vsel %vm473, %v470, %v472
      %v475 = vsel %vm473, %v472, %v470
      %v476 = vsel %vm275, 1, 0
      %v477 = vsel %vm276, 1, 0
      %vm478 = vcmp.eq.s32.totalorder %v476, 1
      %vm479 = vcmp.eq.s32.totalorder %v477, 1
      %v480 = vsel %vm478, %v474, 0.0
      %v481 = vsel %vm479, %v475, 0.0
      %482 = vrot.lane.b32.xlu0 %v407, 113
      %v483 = vpop.permute.xlu0 %482
      %484 = vrot.lane.b32.xlu0 %v408, 113
      %v485 = vpop.permute.xlu0 %484
      %vm486 = vcmp.lt.s32.totalorder %v247, 113
      %v487 = vsel %vm486, %v483, %v485
      %v488 = vsel %vm486, %v485, %v483
      %vm489 = vmand %vm279, %vm273
      %vm490 = vmand %vm280, %vm274
      %v491 = vsel %vm489, 1, 0
      %v492 = vsel %vm490, 1, 0
      %vm493 = vcmp.eq.s32.totalorder %v491, 1
      %vm494 = vcmp.eq.s32.totalorder %v492, 1
      %v495 = vsel %vm493, %v487, 0.0
      %v496 = vsel %vm494, %v488, 0.0
      %497 = vrot.lane.b32.xlu0 %v407, 112
      %v498 = vpop.permute.xlu0 %497
      %499 = vrot.lane.b32.xlu0 %v408, 112
      %v500 = vpop.permute.xlu0 %499
      %vm501 = vcmp.lt.s32.totalorder %v247, 112
      %v502 = vsel %vm501, %v498, %v500
      %v503 = vsel %vm501, %v500, %v498
      %v504 = vsel %vm279, 1, 0
      %v505 = vsel %vm280, 1, 0
      %vm506 = vcmp.eq.s32.totalorder %v504, 1
      %vm507 = vcmp.eq.s32.totalorder %v505, 1
      %v508 = vsel %vm506, %v502, 0.0
      %v509 = vsel %vm507, %v503, 0.0
      %510 = vrot.lane.b32.xlu0 %v407, 111
      %v511 = vpop.permute.xlu0 %510
      %512 = vrot.lane.b32.xlu0 %v408, 111
      %v513 = vpop.permute.xlu0 %512
      %vm514 = vcmp.lt.s32.totalorder %v247, 111
      %v515 = vsel %vm514, %v511, %v513
      %v516 = vsel %vm514, %v513, %v511
      %vm517 = vmand %vm279, %vm275
      %vm518 = vmand %vm280, %vm276
      %v519 = vsel %vm517, 1, 0
      %v520 = vsel %vm518, 1, 0
      %vm521 = vcmp.eq.s32.totalorder %v519, 1
      %vm522 = vcmp.eq.s32.totalorder %v520, 1
      %v523 = vsel %vm521, %v515, 0.0
      %v524 = vsel %vm522, %v516, 0.0
      %vm525 = vcmask 588800
      %v527 = vsel %vm525, %v411, 0
      %v530 = vsel %vm525, %v412, 0
      %532 = vmatpush.msra.mxu0 0.0
      %533 = vmatpush.msra.mxu0 0.0
      %534 = vmatpush.msra.mxu0 0.0
      %535 = vmatpush.msra.mxu0 0.0
      %536 = vmatpush.msra.mxu0 0.0
      %537 = vmatpush.msra.mxu0 0.0
      %538 = vmatpush.msra.mxu0 0.0
      %539 = vmatpush.msra.mxu0 %v523
      %540 = vmatpush.msra.mxu0 %v508
      %541 = vmatpush.msra.mxu0 %v495
      %542 = vmatpush.msra.mxu0 %v480
      %543 = vmatpush.msra.mxu0 %v407
      %544 = vmatpush.msra.mxu0 %v467
      %545 = vmatpush.msra.mxu0 %v454
      %546 = vmatpush.msra.mxu0 %v439
      %547 = vmatpush.msra.mxu0 %v426
      %548 = vmatmul.f32.gmra.mxu0 %v527
      %v549 = vpop.f32.mrf.mxu0
      %v550 = vadd.f32 0.0, %v549
      %551 = vmatmul.f32.gmra.mxu0 %v530
      %v552 = vpop.f32.mrf.mxu0
      %v553 = vadd.f32 0.0, %v552
      %554 = vdwg.mxu0
      %555 = vmatpush.msra.mxu0 0.0
      %556 = vmatpush.msra.mxu0 0.0
      %557 = vmatpush.msra.mxu0 0.0
      %558 = vmatpush.msra.mxu0 0.0
      %559 = vmatpush.msra.mxu0 0.0
      %560 = vmatpush.msra.mxu0 0.0
      %561 = vmatpush.msra.mxu0 0.0
      %562 = vmatpush.msra.mxu0 %v524
      %563 = vmatpush.msra.mxu0 %v509
      %564 = vmatpush.msra.mxu0 %v496
      %565 = vmatpush.msra.mxu0 %v481
      %566 = vmatpush.msra.mxu0 %v408
      %567 = vmatpush.msra.mxu0 %v468
      %568 = vmatpush.msra.mxu0 %v455
      %569 = vmatpush.msra.mxu0 %v440
      %570 = vmatpush.msra.mxu0 %v427
      %571 = vmatmul.f32.gmra.mxu0 %v527
      %v572 = vpop.f32.mrf.mxu0
      %v573 = vadd.f32 0.0, %v572
      %574 = vmatmul.f32.gmra.mxu0 %v530
      %v575 = vpop.f32.mrf.mxu0
      %v576 = vadd.f32 0.0, %v575
      %577 = vdwg.mxu0
      %v578 = vmax.f32 %v550, 0.0
      %v579 = vmax.f32 %v573, 0.0
      %v580 = vmax.f32 %v553, 0.0
      %v581 = vmax.f32 %v576, 0.0
      %v582 = vld [vmem:[%s2 + $0x30] sm:$0xff]
      %v583 = vld [vmem:[%s2 + $0x38] sm:$0xf]
      %584 = vrot.lane.b32.xlu0 %v580, 17
      %v585 = vpop.permute.xlu0 %584
      %586 = vrot.lane.b32.xlu0 %v581, 17
      %v587 = vpop.permute.xlu0 %586
      %v588 = vsel %vm417, %v585, %v587
      %v589 = vsel %vm417, %v587, %v585
      %v590 = vsel %vm424, %v589, 0.0
      %v591 = vsel %vm425, %v588, 0.0
      %592 = vrot.lane.b32.xlu0 %v580, 16
      %v593 = vpop.permute.xlu0 %592
      %594 = vrot.lane.b32.xlu0 %v581, 16
      %v595 = vpop.permute.xlu0 %594
      %v596 = vsel %vm432, %v593, %v595
      %v597 = vsel %vm432, %v595, %v593
      %v598 = vsel %vm437, %v597, 0.0
      %v599 = vsel %vm438, %v596, 0.0
      %600 = vrot.lane.b32.xlu0 %v580, 15
      %v601 = vpop.permute.xlu0 %600
      %602 = vrot.lane.b32.xlu0 %v581, 15
      %v603 = vpop.permute.xlu0 %602
      %v604 = vsel %vm445, %v601, %v603
      %v605 = vsel %vm445, %v603, %v601
      %v606 = vsel %vm452, %v605, 0.0
      %v607 = vsel %vm453, %v604, 0.0
      %608 = vrot.lane.b32.xlu0 %v580, 1
      %v609 = vpop.permute.xlu0 %608
      %610 = vrot.lane.b32.xlu0 %v581, 1
      %v611 = vpop.permute.xlu0 %610
      %v612 = vsel %vm460, %v609, %v611
      %v613 = vsel %vm460, %v611, %v609
      %v614 = vsel %vm465, %v613, 0.0
      %v615 = vsel %vm466, %v612, 0.0
      %616 = vrot.lane.b32.xlu0 %v580, 127
      %v617 = vpop.permute.xlu0 %616
      %618 = vrot.lane.b32.xlu0 %v581, 127
      %v619 = vpop.permute.xlu0 %618
      %v620 = vsel %vm473, %v617, %v619
      %v621 = vsel %vm473, %v619, %v617
      %v622 = vsel %vm478, %v620, 0.0
      %v623 = vsel %vm479, %v621, 0.0
      %624 = vrot.lane.b32.xlu0 %v580, 113
      %v625 = vpop.permute.xlu0 %624
      %626 = vrot.lane.b32.xlu0 %v581, 113
      %v627 = vpop.permute.xlu0 %626
      %v628 = vsel %vm486, %v625, %v627
      %v629 = vsel %vm486, %v627, %v625
      %v630 = vsel %vm493, %v628, 0.0
      %v631 = vsel %vm494, %v629, 0.0
      %632 = vrot.lane.b32.xlu0 %v580, 112
      %v633 = vpop.permute.xlu0 %632
      %634 = vrot.lane.b32.xlu0 %v581, 112
      %v635 = vpop.permute.xlu0 %634
      %v636 = vsel %vm501, %v633, %v635
      %v637 = vsel %vm501, %v635, %v633
      %v638 = vsel %vm506, %v636, 0.0
      %v639 = vsel %vm507, %v637, 0.0
      %640 = vrot.lane.b32.xlu0 %v580, 111
      %v641 = vpop.permute.xlu0 %640
      %642 = vrot.lane.b32.xlu0 %v581, 111
      %v643 = vpop.permute.xlu0 %642
      %v644 = vsel %vm514, %v641, %v643
      %v645 = vsel %vm514, %v643, %v641
      %v646 = vsel %vm521, %v644, 0.0
      %v647 = vsel %vm522, %v645, 0.0
      %v649 = vsel %vm525, %v582, 0
      %v652 = vsel %vm525, %v583, 0
      %654 = vmatpush.msra.mxu0 0.0
      %655 = vmatpush.msra.mxu0 0.0
      %656 = vmatpush.msra.mxu0 0.0
      %657 = vmatpush.msra.mxu0 0.0
      %658 = vmatpush.msra.mxu0 0.0
      %659 = vmatpush.msra.mxu0 0.0
      %660 = vmatpush.msra.mxu0 0.0
      %661 = vmatpush.msra.mxu0 %v646
      %662 = vmatpush.msra.mxu0 %v638
      %663 = vmatpush.msra.mxu0 %v630
      %664 = vmatpush.msra.mxu0 %v622
      %665 = vmatpush.msra.mxu0 %v580
      %666 = vmatpush.msra.mxu0 %v614
      %667 = vmatpush.msra.mxu0 %v606
      %668 = vmatpush.msra.mxu0 %v598
      %669 = vmatpush.msra.mxu0 %v590
      %670 = vmatmul.f32.gmra.mxu0 %v649
      %v671 = vpop.f32.mrf.mxu0
      %v672 = vadd.f32 0.0, %v671
      %673 = vmatmul.f32.gmra.mxu0 %v652
      %v674 = vpop.f32.mrf.mxu0
      %v675 = vadd.f32 0.0, %v674
      %676 = vdwg.mxu0
      %677 = vmatpush.msra.mxu0 0.0
      %678 = vmatpush.msra.mxu0 0.0
      %679 = vmatpush.msra.mxu0 0.0
      %680 = vmatpush.msra.mxu0 0.0
      %681 = vmatpush.msra.mxu0 0.0
      %682 = vmatpush.msra.mxu0 0.0
      %683 = vmatpush.msra.mxu0 0.0
      %684 = vmatpush.msra.mxu0 %v647
      %685 = vmatpush.msra.mxu0 %v639
      %686 = vmatpush.msra.mxu0 %v631
      %687 = vmatpush.msra.mxu0 %v623
      %688 = vmatpush.msra.mxu0 %v581
      %689 = vmatpush.msra.mxu0 %v615
      %690 = vmatpush.msra.mxu0 %v607
      %691 = vmatpush.msra.mxu0 %v599
      %692 = vmatpush.msra.mxu0 %v591
      %693 = vmatmul.f32.gmra.mxu0 %v649
      %v694 = vpop.f32.mrf.mxu0
      %v695 = vadd.f32 0.0, %v694
      %696 = vmatmul.f32.gmra.mxu0 %v652
      %v697 = vpop.f32.mrf.mxu0
      %v698 = vadd.f32 0.0, %v697
      %699 = vdwg.mxu0
      %v700 = vmax.f32 %v672, 0.0
      %v701 = vmax.f32 %v695, 0.0
      %v702 = vmax.f32 %v675, 0.0
      %v703 = vmax.f32 %v698, 0.0
      %v706 = vrot.slane %v578, 4
      %v707 = vrot.slane %v579, 4
      %vm714 = vcmask 1043456
      %v715 = vrot.slane %v700, 4
      %v716 = vrot.slane %v701, 4
      %v717 = vrot.slane %v702, 4
      %v718 = vsel %vm714, %v715, %v717
      %v719 = vrot.slane %v703, 4
      %v720 = vsel %vm714, %v716, %v719
      %v725 = vsel %vm714, %v409, %v706
      %v726 = vsel %vm714, %v410, %v707
      %v727 = vsel %vm714, %v706, %v715
      %v728 = vsel %vm714, %v707, %v716
      %v729 = vld [vmem:[%s3] sm:$0xff]
      %v730 = vld [vmem:[%s3 + $0x8] sm:$0xff]
      %v731 = vld [vmem:[%s3 + $0x10] sm:$0xff]
      %733 = vset.pattern.permute.xlu0 1
      %734 = vperm.xlu0 %733, %v729
      %v735 = vpop.permute.xlu0 %734
      %738 = vset.pattern.permute.xlu0 1
      %739 = vperm.xlu0 %738, %v730
      %v740 = vpop.permute.xlu0 %739
      %743 = vset.pattern.permute.xlu0 1
      %744 = vperm.xlu0 %743, %v731
      %v745 = vpop.permute.xlu0 %744
      %v747 = vmul.f32 %v725, %v735
      %v748 = vmul.f32 %v726, %v735
      %v749 = vmul.f32 %v727, %v740
      %v750 = vmul.f32 %v728, %v740
      %v751 = vmul.f32 %v718, %v745
      %v752 = vmul.f32 %v720, %v745
      %753 = vset.pattern.permute.xlu0 2
      %754 = vperm.xlu0 %753, %v729
      %v755 = vpop.permute.xlu0 %754
      %757 = vset.pattern.permute.xlu0 2
      %758 = vperm.xlu0 %757, %v730
      %v759 = vpop.permute.xlu0 %758
      %761 = vset.pattern.permute.xlu0 2
      %762 = vperm.xlu0 %761, %v731
      %v763 = vpop.permute.xlu0 %762
      %v765 = vadd.f32 %v747, %v755
      %v766 = vadd.f32 %v748, %v755
      %v767 = vadd.f32 %v749, %v759
      %v768 = vadd.f32 %v750, %v759
      %v769 = vadd.f32 %v751, %v763
      %v770 = vadd.f32 %v752, %v763
      %771 = vst [vmem:[%s217] sm:$0xff] %v765
      %772 = vst [vmem:[%s217 + $0x8] sm:$0xff] %v766
      %773 = vst [vmem:[%s217 + $0x10] sm:$0xff] %v767
      %774 = vst [vmem:[%s217 + $0x18] sm:$0xff] %v768
      %775 = vst [vmem:[%s217 + $0x20] sm:$0xff] %v769
      %776 = vst [vmem:[%s217 + $0x28] sm:$0xff] %v770
      %p777 = scmp.lt.s32.totalorder %s15, 1
      %s778 = scalar_select %p777, %s15, 1
      %s779 = smul.addr %s778, 6
      %s780 = smul.addr %s779, 8
      %s781 = scalar_lea.vmem %s4, %s780
      // Predicated region
      $region37: #{revlb_forward.1} parent=35 // pred_check
        %p782 = pneg %p127
      $region38: #{revlb_forward.1} parent=35 // pred_check_branch
        %784 = sbr.rel (%p782) target = $region40
      $region39: #{revlb_forward.1} parent=35 // pred_region
        _
      $region40: #{revlb_forward.1} parent=35 // pred_fallthru
        _
    $region36: #{revlb_forward.1} parent=5 // pred_fallthru
      _
    %p785 = scmp.le.s32.totalorder 2, %s10
    // Predicated region
    $region41: #{revlb_forward.1} parent=5 // pred_check
      %p786 = pneg %p785
    $region42: #{revlb_forward.1} parent=5 // pred_check_branch
      %788 = sbr.rel (%p786) target = $region44
    $region43: #{revlb_forward.1} parent=5 // pred_region
      %s789 = ssub.s32 %s10, 2
      // Predicated region
      $region45: #{revlb_forward.1} parent=43 // pred_check
        %p790 = pneg %p133
      $region46: #{revlb_forward.1} parent=43 // pred_check_branch
        %792 = sbr.rel (%p790) target = $region48
      $region47: #{revlb_forward.1} parent=43 // pred_region
        %p793 = scmp.lt.s32.totalorder %s16, 1
        %s794 = scalar_select %p793, %s16, 1
        %s795 = smul.addr %s794, 6
        %s796 = smul.addr %s795, 8
        %s797 = scalar_lea.vmem %s4, %s796
      $region48: #{revlb_forward.1} parent=43 // pred_fallthru
        _
    $region44: #{revlb_forward.1} parent=5 // pred_fallthru
      _
  $region6: #{revlb_forward.1} parent=0 // loop_footer
    %s14 = sadd.s32 1, %s10
  $region7: #{revlb_forward.1} parent=0 // loop_footer_branch
    %9 = sbr.rel target = $region3
  $region8: #{revlb_forward.1} parent=0 // loop_exit
    _

</llo_original>
